<compile_context>
chip_gen: v5e
topology: v5e:2x2
jax: 0.10.0
libtpu: 0.0.40
codegen_flags: <defaults>
</compile_context>

<pallas_src>
import functools

import jax
import jax.numpy as jnp
from jax.experimental import pallas as pl
from jax.experimental.pallas import tpu as pltpu

IN_FEATURES = 20
HIDDEN = 256
OUT_FEATURES = 10
OUT_PADDED = 128          # lane-dense output width (>= OUT_FEATURES, multiple of 128)
DEFAULT_B_MAX = 4096      # max rows per grid step (sweepable)


def _round_up(n, m):
    return ((n + m - 1) // m) * m


def mlp_kernel(x_ref, w1_ref, b1_ref, w2_ref, b2_ref, o_ref):
    # x_ref:  (bt, 20)    f32   (tiled over the batch grid)
    # w1_ref: (20, 256)   bf16  (resident across grid steps)
    # b1_ref: (1, 256)    f32   (resident)
    # w2_ref: (256, 128)  bf16  (zero-padded cols 10..127, resident)
    # b2_ref: (1, 128)    f32   (zero-padded, resident)
    # o_ref:  (bt, 128)   bf16
    x = x_ref[...].astype(jnp.bfloat16)            # in-kernel VPU cast (free)
    # Layer 1 on the MXU (bf16 in, f32 accumulate); bias + ReLU in f32 on the VPU.
    h = jnp.dot(x, w1_ref[...], preferred_element_type=jnp.float32)
    h = jnp.maximum(h + b1_ref[...], 0.0)
    # Layer 2: explicit bf16 cast for the MXU, f32 accumulation.
    y = jnp.dot(h.astype(jnp.bfloat16), w2_ref[...],
                preferred_element_type=jnp.float32)
    # Accumulate in f32, store bf16 (halves output HBM writeback, stays lane-dense).
    o_ref[...] = (y + b2_ref[...]).astype(o_ref.dtype)


def prepare_params(w1, b1, w2, b2):
    """One-time weight preprocessing (hoisted out of the per-call hot path)."""
    pad_n = OUT_PADDED - OUT_FEATURES
    w1b = w1.astype(jnp.bfloat16)                                     # (20, 256)
    b1f = b1.astype(jnp.float32).reshape(1, HIDDEN)                   # (1, 256)
    w2b = jnp.pad(w2, ((0, 0), (0, pad_n))).astype(jnp.bfloat16)      # (256, 128)
    b2p = jnp.pad(b2.reshape(1, OUT_FEATURES),
                  ((0, 0), (0, pad_n))).astype(jnp.float32)           # (1, 128)
    return (w1b, b1f, w2b, b2p)


def _choose_tiles(B, b_max):
    # Even number (>=2) of near-equal, 8-aligned tiles:
    #   >=2 steps keeps both v7x TensorCores busy via dimension_semantics=parallel;
    #   near-equal split caps padding waste at < 8 rows per tile.
    n_tiles = max(2, 2 * ((B + b_max - 1) // b_max))
    bt = _round_up(max(1, -(-B // n_tiles)), 8)
    return bt, n_tiles


@functools.partial(jax.jit, static_argnames=("b_max",))
def my_sequential_forward(x, params, *, b_max=DEFAULT_B_MAX):
    """x: (B, 20) f32; params = prepare_params(...). Returns (B, 10) f32."""
    w1b, b1f, w2b, b2p = params
    B = x.shape[0]
    bt, n_tiles = _choose_tiles(B, b_max)
    Bp = bt * n_tiles

    xp = x if Bp == B else jnp.pad(x, ((0, Bp - B), (0, 0)))

    cost = pl.CostEstimate(
        flops=2 * Bp * (IN_FEATURES * HIDDEN + HIDDEN * OUT_PADDED),
        transcendentals=0,
        bytes_accessed=(Bp * (IN_FEATURES * 4 + OUT_PADDED * 2)          # x in, y out
                        + (IN_FEATURES * HIDDEN + HIDDEN * OUT_PADDED) * 2  # weights
                        + (HIDDEN + OUT_PADDED) * 4),                       # biases
    )

    y = pl.pallas_call(
        mlp_kernel,
        out_shape=jax.ShapeDtypeStruct((Bp, OUT_PADDED), jnp.bfloat16),
        grid=(n_tiles,),
        in_specs=[
            pl.BlockSpec((bt, IN_FEATURES), lambda i: (i, 0)),      # x: tiled
            pl.BlockSpec((IN_FEATURES, HIDDEN), lambda i: (0, 0)),  # W1: resident
            pl.BlockSpec((1, HIDDEN), lambda i: (0, 0)),            # b1: resident
            pl.BlockSpec((HIDDEN, OUT_PADDED), lambda i: (0, 0)),   # W2: resident
            pl.BlockSpec((1, OUT_PADDED), lambda i: (0, 0)),        # b2: resident
        ],
        out_specs=pl.BlockSpec((bt, OUT_PADDED), lambda i: (i, 0)),
        compiler_params=pltpu.CompilerParams(
            dimension_semantics=("parallel",),
            vmem_limit_bytes=32 * 1024 * 1024,
        ),
        cost_estimate=cost,
    )(xp, w1b, b1f, w2b, b2p)

    # Under jit this slice/cast fuses into the same program; padded rows (>= B)
    # and padded output columns (>= 10) are dropped here.
    return y[:B, :OUT_FEATURES].astype(jnp.float32)


def init_linear(key, fan_in, fan_out):
    # Mimic nn.Linear's default U(-1/sqrt(fan_in), +1/sqrt(fan_in)); weights stored
    # pre-transposed as (in, out) so the kernel does plain x @ W.
    kw, kb = jax.random.split(key)
    bound = 1.0 / jnp.sqrt(fan_in)
    w = jax.random.uniform(kw, (fan_in, fan_out), jnp.float32, -bound, bound)
    b = jax.random.uniform(kb, (1, fan_out), jnp.float32, -bound, bound)
    return w, b


def reference(x, w1, b1, w2, b2):
    # Same numerics as the kernel: bf16 operands, f32 accumulation; final bf16
    # quantization matches the kernel's bf16 output store.
    hp = jax.lax.Precision.HIGHEST
    xr = x.astype(jnp.bfloat16).astype(jnp.float32)
    w1r = w1.astype(jnp.bfloat16).astype(jnp.float32)
    w2r = w2.astype(jnp.bfloat16).astype(jnp.float32)
    h = jnp.maximum(jnp.dot(xr, w1r, precision=hp) + b1, 0.0)
    hr = h.astype(jnp.bfloat16).astype(jnp.float32)
    y = jnp.dot(hr, w2r, precision=hp) + b2
    return y.astype(jnp.bfloat16).astype(jnp.float32)


if __name__ == "__main__":
    key = jax.random.PRNGKey(0)
    kx, k1, k2 = jax.random.split(key, 3)

    w1, b1 = init_linear(k1, IN_FEATURES, HIDDEN)
    w2, b2 = init_linear(k2, HIDDEN, OUT_FEATURES)
    params = prepare_params(w1, b1, w2, b2)   # one-time weight prep

    # Canonical tiny case (d2l uses X = torch.rand(2, 20)).
    B = 2
    x = jax.random.uniform(kx, (B, IN_FEATURES), jnp.float32)
    out = jax.block_until_ready(my_sequential_forward(x, params))
    ref = reference(x, w1, b1, w2, b2)
    assert out.shape == (B, OUT_FEATURES)
    assert jnp.allclose(out, ref, atol=3e-2, rtol=3e-2)

    # Larger batch: exercises multi-step grid, near-equal tiling, resident weights.
    B2 = 600
    x2 = jax.random.uniform(jax.random.PRNGKey(1), (B2, IN_FEATURES), jnp.float32)
    out2 = jax.block_until_ready(my_sequential_forward(x2, params))
    ref2 = reference(x2, w1, b1, w2, b2)
    assert out2.shape == (B2, OUT_FEATURES)
    assert jnp.allclose(out2, ref2, atol=3e-2, rtol=3e-2)

    print("KERNEL_OK")
</pallas_src>

<mosaic_0001>
module attributes {stable_mosaic.version = 11 : i64} {
  func.func @mlp_kernel(%arg0: i32, %arg1: memref<8x20xf32, #tpu.memory_space<vmem>>, %arg2: memref<20x256xbf16, #tpu.memory_space<vmem>>, %arg3: memref<1x256xf32, #tpu.memory_space<vmem>>, %arg4: memref<256x128xbf16, #tpu.memory_space<vmem>>, %arg5: memref<1x128xf32, #tpu.memory_space<vmem>>, %arg6: memref<8x128xbf16, #tpu.memory_space<vmem>>) attributes {dimension_semantics = [#tpu.dimension_semantics<parallel>], iteration_bounds = array<i64: 2>, scalar_prefetch = 0 : i64, scratch_operands = 0 : i64, tpu.core_type = #tpu.core_type<tc>, window_params = [{transform_indices = @transform_0, window_bounds = array<i64: 8, 20>}, {pipeline_mode = #tpu.pipeline_mode<synchronous>, transform_indices = @transform_1, window_bounds = array<i64: 20, 256>}, {pipeline_mode = #tpu.pipeline_mode<synchronous>, transform_indices = @transform_2, window_bounds = array<i64: 1, 256>}, {pipeline_mode = #tpu.pipeline_mode<synchronous>, transform_indices = @transform_3, window_bounds = array<i64: 256, 128>}, {pipeline_mode = #tpu.pipeline_mode<synchronous>, transform_indices = @transform_4, window_bounds = array<i64: 1, 128>}, {transform_indices = @transform_5, window_bounds = array<i64: 8, 128>}]} {
    %c0 = arith.constant 0 : index
    %c0_0 = arith.constant 0 : index
    %0 = vector.load %arg1[%c0, %c0_0] : memref<8x20xf32, #tpu.memory_space<vmem>>, vector<8x20xf32>
    %1 = arith.truncf %0 : vector<8x20xf32> to vector<8x20xbf16>
    %c0_1 = arith.constant 0 : index
    %c0_2 = arith.constant 0 : index
    %2 = vector.load %arg2[%c0_1, %c0_2] : memref<20x256xbf16, #tpu.memory_space<vmem>>, vector<20x256xbf16>
    %cst = arith.constant dense<0.000000e+00> : vector<8x256xf32>
    %3 = tpu.matmul %1, %2, %cst {dimension_numbers = #tpu.dot_dimension_numbers<[1], [0], [0], [1], [0, 0, 1, 1], [], []>} : vector<8x20xbf16>, vector<20x256xbf16>, vector<8x256xf32> -> vector<8x256xf32>
    %c0_3 = arith.constant 0 : index
    %c0_4 = arith.constant 0 : index
    %4 = vector.load %arg3[%c0_3, %c0_4] : memref<1x256xf32, #tpu.memory_space<vmem>>, vector<1x256xf32>
    %5 = vector.broadcast %4 : vector<1x256xf32> to vector<8x256xf32>
    %6 = arith.addf %3, %5 : vector<8x256xf32>
    %cst_5 = arith.constant 0.000000e+00 : f32
    %7 = vector.broadcast %cst_5 : f32 to vector<8x256xf32>
    %8 = arith.maximumf %6, %7 : vector<8x256xf32>
    %9 = arith.truncf %8 : vector<8x256xf32> to vector<8x256xbf16>
    %c0_6 = arith.constant 0 : index
    %c0_7 = arith.constant 0 : index
    %10 = vector.load %arg4[%c0_6, %c0_7] : memref<256x128xbf16, #tpu.memory_space<vmem>>, vector<256x128xbf16>
    %cst_8 = arith.constant dense<0.000000e+00> : vector<8x128xf32>
    %11 = tpu.matmul %9, %10, %cst_8 {dimension_numbers = #tpu.dot_dimension_numbers<[1], [0], [0], [1], [0, 0, 1, 1], [], []>} : vector<8x256xbf16>, vector<256x128xbf16>, vector<8x128xf32> -> vector<8x128xf32>
    %c0_9 = arith.constant 0 : index
    %c0_10 = arith.constant 0 : index
    %12 = vector.load %arg5[%c0_9, %c0_10] : memref<1x128xf32, #tpu.memory_space<vmem>>, vector<1x128xf32>
    %13 = vector.broadcast %12 : vector<1x128xf32> to vector<8x128xf32>
    %14 = arith.addf %11, %13 : vector<8x128xf32>
    %15 = arith.truncf %14 : vector<8x128xf32> to vector<8x128xbf16>
    %c0_11 = arith.constant 0 : index
    %c0_12 = arith.constant 0 : index
    %16 = vector.load %arg6[%c0_11, %c0_12] : memref<8x128xbf16, #tpu.memory_space<vmem>>, vector<8x128xbf16>
    tpu.vector_store %arg6[%c0_11, %c0_12], %15 {strides = array<i32>} : memref<8x128xbf16, #tpu.memory_space<vmem>>, vector<8x128xbf16>,
    return
  }
  func.func @transform_0(%arg0: i32) -> (i32, i32) {
    %c0_i32 = arith.constant 0 : i32
    %c0_i32_0 = arith.constant 0 : i32
    return %arg0, %c0_i32 : i32, i32
  }
  func.func @transform_1(%arg0: i32) -> (i32, i32) {
    %c0_i32 = arith.constant 0 : i32
    %c0_i32_0 = arith.constant 0 : i32
    %c0_i32_1 = arith.constant 0 : i32
    return %c0_i32, %c0_i32_0 : i32, i32
  }
  func.func @transform_2(%arg0: i32) -> (i32, i32) {
    %c0_i32 = arith.constant 0 : i32
    %c0_i32_0 = arith.constant 0 : i32
    %c0_i32_1 = arith.constant 0 : i32
    return %c0_i32, %c0_i32_0 : i32, i32
  }
  func.func @transform_3(%arg0: i32) -> (i32, i32) {
    %c0_i32 = arith.constant 0 : i32
    %c0_i32_0 = arith.constant 0 : i32
    %c0_i32_1 = arith.constant 0 : i32
    return %c0_i32, %c0_i32_0 : i32, i32
  }
  func.func @transform_4(%arg0: i32) -> (i32, i32) {
    %c0_i32 = arith.constant 0 : i32
    %c0_i32_0 = arith.constant 0 : i32
    %c0_i32_1 = arith.constant 0 : i32
    return %c0_i32, %c0_i32_0 : i32, i32
  }
  func.func @transform_5(%arg0: i32) -> (i32, i32) {
    %c0_i32 = arith.constant 0 : i32
    %c0_i32_0 = arith.constant 0 : i32
    return %arg0, %c0_i32 : i32, i32
  }
}

</mosaic_0001>

<llo_original>
// kernel: my_sequential_forward.1
$region0: #{my_sequential_forward.1}
  #allocation0 [shape = 'u32[]', space=smem, size = 0x4, offset = 0x4, fixed_abs, tag = 'smem constant byte address 0x4 - core index']
  #allocation1 [shape = 'u32[72,128]{1,0:T(1,128)}', space=vmem, size = 0x9000, scoped, tag = 'internal scratch']
  %s0 = inlined_call_operand.vmem [shape: f32[16,20], index: 0, kind: input, shape index: {}]
  %s1 = inlined_call_operand.hbm [shape: bf16[20,256], index: 1, kind: input, shape index: {}]
  %s2 = inlined_call_operand.vmem [shape: f32[1,256], index: 2, kind: input, shape index: {}]
  %s3 = inlined_call_operand.hbm [shape: bf16[256,128], index: 3, kind: input, shape index: {}]
  %s4 = inlined_call_operand.vmem [shape: f32[1,128], index: 4, kind: input, shape index: {}]
  %s5 = inlined_call_operand.vmem [shape: bf16[16,128], index: 5, kind: output, shape index: {}]
  %s6 = sld [smem:[#allocation0]]
  $region61: #{my_sequential_forward.1} parent=0
    _
  %s8 = ssub.s32 1, %s6
  %s9 = scalar_select 0, %s8, %s6
  $region1: #{my_sequential_forward.1} parent=0
    #allocation2 [shape = 'u8[12288]{0}', space=vmem, size = 0x3000, scoped, tag = 'input window, operand 1, single buffered']
    #allocation3 [shape = 's32[2]{0}', space=sflag, size = 0x8, scoped, tag = 'scoped memory for my_sequential_forward.1']
    #allocation4 [shape = 'u8[65536]{0}', space=vmem, size = 0x10000, scoped, tag = 'input window, operand 3, single buffered']
    #allocation5 [shape = 's32[1]{0}', space=sflag, size = 0x4, scoped, tag = 'scoped memory for my_sequential_forward.1']
    %10 = vsyncpa [#allocation3], 0
    %11 = vsyncpa [#allocation5], 0
    loop: start=0, step=1, limit=4
    $region2: #{my_sequential_forward.1} parent=1 // loop_pre_header
      _
    $region3: #{my_sequential_forward.1} parent=1 // loop_header
      %s13 = sphi 0, %s17
      %p14 = scmp.ge.s32.totalorder %s13, 4
      %s23 = sphi 0, %s25
      %s26 = sphi 0, %s23
      %s27 = sphi 0, %s26
      %s43 = sphi 0, %s27
      %s47 = sphi 0, %s47
      %s49 = sphi 0, %s47
      %s50 = sphi 0, %s49
      %s64 = sphi 0, %s50
      %s68 = sphi 0, %s68
      %s70 = sphi 0, %s68
      %s71 = sphi 0, %s70
      %s85 = sphi 0, %s71
      %s89 = sphi 0, %s89
      %s91 = sphi 0, %s89
      %s92 = sphi 0, %s91
      %s106 = sphi 0, %s92
      %s110 = sphi 0, %s110
      %s112 = sphi 0, %s110
      %s113 = sphi 0, %s112
      %s127 = sphi 0, %s113
      %s133 = sphi 0, %s135
      %s136 = sphi 0, %s133
      %s137 = sphi 0, %s136
      %s153 = sphi 0, %s137
    $region4: #{my_sequential_forward.1} parent=1 // loop_header_branch
      %16 = sbr.rel (%p14) target = $region8
    $region5: #{my_sequential_forward.1} parent=1 // loop_body
      %s18 = ssub.s32 %s13, 1
      %s19 = ssub.s32 %s13, 2
      %s20 = sadd.s32 %s13, 1
      %s21 = ssub.s32 %s13, %s20
      %p22 = scmp.eq.s32.totalorder %s21, 0
      %s24 = sadd.s32 %s23, 1
      %s25 = scalar_select %p22, %s23, %s24
      %p28 = pneg %p22
      %p29 = scmp.eq.s32.totalorder %s13, 1
      %p30 = por %p28, %p29
      %p31 = scmp.ne.s32.totalorder %s23, %s26
      %p32 = scmp.eq.s32.totalorder %s13, 0
      %p33 = por %p31, %p32
      %p34 = scmp.ne.s32.totalorder %s23, %s26
      %p35 = scmp.eq.s32.totalorder %s18, 1
      %p36 = por %p34, %p35
      %p37 = scmp.ne.s32.totalorder %s26, %s27
      %p38 = scmp.eq.s32.totalorder %s18, 0
      %p39 = por %p37, %p38
      %p40 = scmp.ne.s32.totalorder %s26, %s27
      %p41 = scmp.eq.s32.totalorder %s19, 1
      %p42 = por %p40, %p41
      %p44 = scmp.ne.s32.totalorder %s27, %s43
      %p45 = scmp.eq.s32.totalorder %s19, 0
      %p46 = por %p44, %p45
      %s48 = sadd.s32 %s47, 1
      %p51 = scmp.eq.s32.totalorder %s13, 1
      %p52 = scmp.ne.s32.totalorder %s47, %s49
      %p53 = scmp.eq.s32.totalorder %s13, 0
      %p54 = por %p52, %p53
      %p55 = scmp.ne.s32.totalorder %s47, %s49
      %p56 = scmp.eq.s32.totalorder %s18, 1
      %p57 = por %p55, %p56
      %p58 = scmp.ne.s32.totalorder %s49, %s50
      %p59 = scmp.eq.s32.totalorder %s18, 0
      %p60 = por %p58, %p59
      %p61 = scmp.ne.s32.totalorder %s49, %s50
      %p62 = scmp.eq.s32.totalorder %s19, 1
      %p63 = por %p61, %p62
      %p65 = scmp.ne.s32.totalorder %s50, %s64
      %p66 = scmp.eq.s32.totalorder %s19, 0
      %p67 = por %p65, %p66
      %s69 = sadd.s32 %s68, 1
      %p72 = scmp.eq.s32.totalorder %s13, 1
      %p73 = scmp.ne.s32.totalorder %s68, %s70
      %p74 = scmp.eq.s32.totalorder %s13, 0
      %p75 = por %p73, %p74
      %p76 = scmp.ne.s32.totalorder %s68, %s70
      %p77 = scmp.eq.s32.totalorder %s18, 1
      %p78 = por %p76, %p77
      %p79 = scmp.ne.s32.totalorder %s70, %s71
      %p80 = scmp.eq.s32.totalorder %s18, 0
      %p81 = por %p79, %p80
      %p82 = scmp.ne.s32.totalorder %s70, %s71
      %p83 = scmp.eq.s32.totalorder %s19, 1
      %p84 = por %p82, %p83
      %p86 = scmp.ne.s32.totalorder %s71, %s85
      %p87 = scmp.eq.s32.totalorder %s19, 0
      %p88 = por %p86, %p87
      %s90 = sadd.s32 %s89, 1
      %p93 = scmp.eq.s32.totalorder %s13, 1
      %p94 = scmp.ne.s32.totalorder %s89, %s91
      %p95 = scmp.eq.s32.totalorder %s13, 0
      %p96 = por %p94, %p95
      %p97 = scmp.ne.s32.totalorder %s89, %s91
      %p98 = scmp.eq.s32.totalorder %s18, 1
      %p99 = por %p97, %p98
      %p100 = scmp.ne.s32.totalorder %s91, %s92
      %p101 = scmp.eq.s32.totalorder %s18, 0
      %p102 = por %p100, %p101
      %p103 = scmp.ne.s32.totalorder %s91, %s92
      %p104 = scmp.eq.s32.totalorder %s19, 1
      %p105 = por %p103, %p104
      %p107 = scmp.ne.s32.totalorder %s92, %s106
      %p108 = scmp.eq.s32.totalorder %s19, 0
      %p109 = por %p107, %p108
      %s111 = sadd.s32 %s110, 1
      %p114 = scmp.eq.s32.totalorder %s13, 1
      %p115 = scmp.ne.s32.totalorder %s110, %s112
      %p116 = scmp.eq.s32.totalorder %s13, 0
      %p117 = por %p115, %p116
      %p118 = scmp.ne.s32.totalorder %s110, %s112
      %p119 = scmp.eq.s32.totalorder %s18, 1
      %p120 = por %p118, %p119
      %p121 = scmp.ne.s32.totalorder %s112, %s113
      %p122 = scmp.eq.s32.totalorder %s18, 0
      %p123 = por %p121, %p122
      %p124 = scmp.ne.s32.totalorder %s112, %s113
      %p125 = scmp.eq.s32.totalorder %s19, 1
      %p126 = por %p124, %p125
      %p128 = scmp.ne.s32.totalorder %s113, %s127
      %p129 = scmp.eq.s32.totalorder %s19, 0
      %p130 = por %p128, %p129
      %s131 = ssub.s32 %s13, %s20
      %p132 = scmp.eq.s32.totalorder %s131, 0
      %s134 = sadd.s32 %s133, 1
      %s135 = scalar_select %p132, %s133, %s134
      %p138 = pneg %p132
      %p139 = scmp.eq.s32.totalorder %s13, 1
      %p140 = por %p138, %p139
      %p141 = scmp.ne.s32.totalorder %s133, %s136
      %p142 = scmp.eq.s32.totalorder %s13, 0
      %p143 = por %p141, %p142
      %p144 = scmp.ne.s32.totalorder %s133, %s136
      %p145 = scmp.eq.s32.totalorder %s18, 1
      %p146 = por %p144, %p145
      %p147 = scmp.ne.s32.totalorder %s136, %s137
      %p148 = scmp.eq.s32.totalorder %s18, 0
      %p149 = por %p147, %p148
      %p150 = scmp.ne.s32.totalorder %s136, %s137
      %p151 = scmp.eq.s32.totalorder %s19, 1
      %p152 = por %p150, %p151
      %p154 = scmp.ne.s32.totalorder %s137, %s153
      %p155 = scmp.eq.s32.totalorder %s19, 0
      %p156 = por %p154, %p155
      %p157 = scmp.le.s32.totalorder 1, %s13
      %p158 = scmp.lt.s32.totalorder %s13, 3
      %p159 = pnand %p157, %p158
      %p160 = pneg %p159
      // Predicated region
      $region9: #{my_sequential_forward.1} parent=5 // pred_check
        _
      $region10: #{my_sequential_forward.1} parent=5 // pred_check_branch
        %162 = sbr.rel (%p159) target = $region12
      $region11: #{my_sequential_forward.1} parent=5 // pred_region
        %s163 = ssub.s32 %s13, 1
        // Predicated region
        $region13: #{my_sequential_forward.1} parent=11 // pred_check
          %p164 = pneg %p60
        $region14: #{my_sequential_forward.1} parent=11 // pred_check_branch
          %166 = sbr.rel (%p164) target = $region16
        $region15: #{my_sequential_forward.1} parent=11 // pred_region
          %168 = vsyncadd [#allocation3], 0
          %s169 = sshll.u32 %s1, 4
          %s170 = int_to_ptr.hbm [resolvable:$true] %s169
          %s171 = sshll.u32 [#allocation2], 4
          %s172 = int_to_ptr.vmem [resolvable:$true] %s171
          %177 = dma.hbm_to_vmem [thread:$0]  %s170, 384, %s172, [#allocation3], 128, 128, 8
        $region16: #{my_sequential_forward.1} parent=11 // pred_fallthru
          _
        // Predicated region
        $region17: #{my_sequential_forward.1} parent=11 // pred_check
          %p178 = pneg %p81
        $region18: #{my_sequential_forward.1} parent=11 // pred_check_branch
          %180 = sbr.rel (%p178) target = $region20
        $region19: #{my_sequential_forward.1} parent=11 // pred_region
          _
        $region20: #{my_sequential_forward.1} parent=11 // pred_fallthru
          _
        // Predicated region
        $region21: #{my_sequential_forward.1} parent=11 // pred_check
          %p181 = pneg %p102
        $region22: #{my_sequential_forward.1} parent=11 // pred_check_branch
          %183 = sbr.rel (%p181) target = $region24
        $region23: #{my_sequential_forward.1} parent=11 // pred_region
          %185 = vsyncadd [#allocation5], 0
          %s186 = sshll.u32 %s3, 4
          %s187 = int_to_ptr.hbm [resolvable:$true] %s186
          %s188 = sshll.u32 [#allocation4], 4
          %s189 = int_to_ptr.vmem [resolvable:$true] %s188
          %194 = dma.hbm_to_vmem [thread:$0]  %s187, 2048, %s189, [#allocation5], 64, 64, 4
        $region24: #{my_sequential_forward.1} parent=11 // pred_fallthru
          _
        // Predicated region
        $region25: #{my_sequential_forward.1} parent=11 // pred_check
          %p195 = pneg %p123
        $region26: #{my_sequential_forward.1} parent=11 // pred_check_branch
          %197 = sbr.rel (%p195) target = $region28
        $region27: #{my_sequential_forward.1} parent=11 // pred_region
          _
        $region28: #{my_sequential_forward.1} parent=11 // pred_fallthru
          _
      $region12: #{my_sequential_forward.1} parent=5 // pred_fallthru
        _
      %p198 = scmp.lt.s32.totalorder %s13, 2
      // Predicated region
      $region29: #{my_sequential_forward.1} parent=5 // pred_check
        %p199 = pneg %p198
      $region30: #{my_sequential_forward.1} parent=5 // pred_check_branch
        %201 = sbr.rel (%p199) target = $region32
      $region31: #{my_sequential_forward.1} parent=5 // pred_region
        // Predicated region
        $region33: #{my_sequential_forward.1} parent=31 // pred_check
          %p202 = pneg %p33
        $region34: #{my_sequential_forward.1} parent=31 // pred_check_branch
          %204 = sbr.rel (%p202) target = $region36
        $region35: #{my_sequential_forward.1} parent=31 // pred_region
          %p205 = scmp.lt.s32.totalorder %s13, 1
          %s206 = scalar_select %p205, %s13, 1
          %s207 = smul.addr %s206, 8
          %s208 = scalar_lea.vmem %s0, %s207
        $region36: #{my_sequential_forward.1} parent=31 // pred_fallthru
          _
      $region32: #{my_sequential_forward.1} parent=5 // pred_fallthru
        _
      %p209 = scmp.le.s32.totalorder 1, %s13
      %p210 = scmp.lt.s32.totalorder %s13, 3
      %p211 = pnand %p209, %p210
      %p212 = pneg %p211
      // Predicated region
      $region37: #{my_sequential_forward.1} parent=5 // pred_check
        _
      $region38: #{my_sequential_forward.1} parent=5 // pred_check_branch
        %214 = sbr.rel (%p211) target = $region40
      $region39: #{my_sequential_forward.1} parent=5 // pred_region
        %s215 = ssub.s32 %s13, 1
        // Predicated region
        $region41: #{my_sequential_forward.1} parent=39 // pred_check
          %p216 = pneg %p60
        $region42: #{my_sequential_forward.1} parent=39 // pred_check_branch
          %218 = sbr.rel (%p216) target = $region44
        $region43: #{my_sequential_forward.1} parent=39 // pred_region
          %220 = dma.done [#allocation3], 384
        $region44: #{my_sequential_forward.1} parent=39 // pred_fallthru
          _
        // Predicated region
        $region45: #{my_sequential_forward.1} parent=39 // pred_check
          %p221 = pneg %p102
        $region46: #{my_sequential_forward.1} parent=39 // pred_check_branch
          %223 = sbr.rel (%p221) target = $region48
        $region47: #{my_sequential_forward.1} parent=39 // pred_region
          %225 = dma.done [#allocation5], 2048
        $region48: #{my_sequential_forward.1} parent=39 // pred_fallthru
          _
        %p226 = scmp.lt.s32.totalorder %s18, 1
        %s227 = scalar_select %p226, %s18, 1
        %s228 = smul.addr %s227, 8
        %s229 = scalar_lea.vmem %s0, %s228
        %p230 = pneg %p39
        %p231 = pneg %p36
        %p232 = pneg %p60
        %p233 = pneg %p57
        %p234 = pneg %p81
        %p235 = pneg %p78
        %p236 = pneg %p102
        %p237 = pneg %p99
        %p238 = pneg %p123
        %p239 = pneg %p120
        %p240 = pneg %p149
        %p241 = pneg %p146
        %p242 = scmp.lt.s32.totalorder %s18, 1
        %s243 = scalar_select %p242, %s18, 1
        %s244 = smul.addr %s243, 4
        %s245 = scalar_lea.vmem %s5, %s244
        %p246 = scmp.lt.s32.totalorder %s18, 1
        %s247 = scalar_select %p246, %s18, 1
        %s248 = smul.addr %s247, 8
        %s249 = scalar_lea.vmem %s0, %s248
        %p250 = scmp.lt.s32.totalorder %s18, 1
        %s251 = scalar_select %p250, %s18, 1
        %s252 = smul.addr %s251, 4
        %s253 = scalar_lea.vmem %s5, %s252
        %v255 = vld [vmem:[%s249] sm:$0xff]
        %v256 = vpack.c.bf16 %v255, %v255
        %v257 = vld [vmem:[#allocation2] sm:$0xff]
        %v258 = vld [vmem:[#allocation2 + $0x8] sm:$0xff]
        %v259 = vld [vmem:[#allocation2 + $0x10] sm:$0x33]
        %v260 = vld [vmem:[%s2] sm:$0x3]
        %v262 = vperm.slane %v260, 0
        %v263 = vperm.slane %v260, 1
        %v269 = vunpack.c.l.b16 %v257
        %v270 = vunpack.c.h.b16 %v257
        %v271 = vunpack.c.l.b16 %v258
        %v272 = vunpack.c.h.b16 %v258
        %v273 = vunpack.c.l.b16 %v259
        %v274 = vunpack.c.h.b16 %v259
        %v275 = vpack.c.b16 %v271, %v269
        %v276 = vpack.c.b16 %v272, %v270
        %v277 = vpack.c.b16 %v273, %v273
        %v278 = vpack.c.b16 %v274, %v274
        %vm281 = vcmask 162816
        %v283 = vsel %vm281, %v256, 0
        %vm285 = vcmask 1041408
        %v287 = vsel %vm285, %v277, 0
        %v290 = vsel %vm285, %v278, 0
        %292 = vmatpush.bf16.msra.mxu0 0
        %293 = vmatpush.bf16.msra.mxu0 0
        %294 = vmatpush.bf16.msra.mxu0 0
        %295 = vmatpush.bf16.msra.mxu0 0
        %296 = vmatpush.bf16.msra.mxu0 0
        %297 = vmatpush.bf16.msra.mxu0 0
        %298 = vmatpush.bf16.msra.mxu0 %v287
        %299 = vmatpush.bf16.msra.mxu0 %v275
        %300 = vmatmul.bf16.gmra.mxu0 %v283
        %v301 = vpop.f32.mrf.mxu0
        %v302 = vadd.f32 %v262, %v301
        %v303 = vpop.f32.mrf.mxu0
        %304 = vdwg.mxu0
        %305 = vmatpush.bf16.msra.mxu0 0
        %306 = vmatpush.bf16.msra.mxu0 0
        %307 = vmatpush.bf16.msra.mxu0 0
        %308 = vmatpush.bf16.msra.mxu0 0
        %309 = vmatpush.bf16.msra.mxu0 0
        %310 = vmatpush.bf16.msra.mxu0 0
        %311 = vmatpush.bf16.msra.mxu0 %v290
        %312 = vmatpush.bf16.msra.mxu0 %v276
        %313 = vmatmul.bf16.gmra.mxu0 %v283
        %v314 = vpop.f32.mrf.mxu0
        %v315 = vadd.f32 %v263, %v314
        %v316 = vpop.f32.mrf.mxu0
        %317 = vdwg.mxu0
        %v318 = vmax.f32 %v302, 0.0
        %v319 = vmax.f32 %v315, 0.0
        %v320 = vpack.c.bf16 %v318, %v318
        %v321 = vpack.c.bf16 %v319, %v319
        %v322 = vld [vmem:[#allocation4] sm:$0xf]
        %v323 = vld [vmem:[#allocation4 + $0x4] sm:$0xf]
        %v324 = vld [vmem:[#allocation4 + $0x8] sm:$0xf]
        %v325 = vld [vmem:[#allocation4 + $0xc] sm:$0xf]
        %v326 = vld [vmem:[#allocation4 + $0x10] sm:$0xf]
        %v327 = vld [vmem:[#allocation4 + $0x14] sm:$0xf]
        %v328 = vld [vmem:[#allocation4 + $0x18] sm:$0xf]
        %v329 = vld [vmem:[#allocation4 + $0x1c] sm:$0xf]
        %v330 = vld [vmem:[#allocation4 + $0x20] sm:$0xf]
        %v331 = vld [vmem:[#allocation4 + $0x24] sm:$0xf]
        %v332 = vld [vmem:[#allocation4 + $0x28] sm:$0xf]
        %v333 = vld [vmem:[#allocation4 + $0x2c] sm:$0xf]
        %v334 = vld [vmem:[#allocation4 + $0x30] sm:$0xf]
        %v335 = vld [vmem:[#allocation4 + $0x34] sm:$0xf]
        %v336 = vld [vmem:[#allocation4 + $0x38] sm:$0xf]
        %v337 = vld [vmem:[#allocation4 + $0x3c] sm:$0xf]
        %v338 = vld [vmem:[#allocation4 + $0x40] sm:$0xf]
        %v339 = vld [vmem:[#allocation4 + $0x44] sm:$0xf]
        %v340 = vld [vmem:[#allocation4 + $0x48] sm:$0xf]
        %v341 = vld [vmem:[#allocation4 + $0x4c] sm:$0xf]
        %v342 = vld [vmem:[#allocation4 + $0x50] sm:$0xf]
        %v343 = vld [vmem:[#allocation4 + $0x54] sm:$0xf]
        %v344 = vld [vmem:[#allocation4 + $0x58] sm:$0xf]
        %v345 = vld [vmem:[#allocation4 + $0x5c] sm:$0xf]
        %v346 = vld [vmem:[#allocation4 + $0x60] sm:$0xf]
        %v347 = vld [vmem:[#allocation4 + $0x64] sm:$0xf]
        %v348 = vld [vmem:[#allocation4 + $0x68] sm:$0xf]
        %v349 = vld [vmem:[#allocation4 + $0x6c] sm:$0xf]
        %v350 = vld [vmem:[#allocation4 + $0x70] sm:$0xf]
        %v351 = vld [vmem:[#allocation4 + $0x74] sm:$0xf]
        %v352 = vld [vmem:[#allocation4 + $0x78] sm:$0xf]
        %v353 = vld [vmem:[#allocation4 + $0x7c] sm:$0xf]
        %v354 = vld [vmem:[%s4] sm:$0x1]
        %v356 = vperm.slane %v354, 0
        %v390 = vunpack.c.l.b16 %v322
        %v391 = vunpack.c.l.b16 %v323
        %v392 = vunpack.c.l.b16 %v324
        %v393 = vunpack.c.l.b16 %v325
        %v394 = vunpack.c.l.b16 %v326
        %v395 = vunpack.c.l.b16 %v327
        %v396 = vunpack.c.l.b16 %v328
        %v397 = vunpack.c.l.b16 %v329
        %v398 = vunpack.c.l.b16 %v330
        %v399 = vunpack.c.l.b16 %v331
        %v400 = vunpack.c.l.b16 %v332
        %v401 = vunpack.c.l.b16 %v333
        %v402 = vunpack.c.l.b16 %v334
        %v403 = vunpack.c.l.b16 %v335
        %v404 = vunpack.c.l.b16 %v336
        %v405 = vunpack.c.l.b16 %v337
        %v406 = vunpack.c.l.b16 %v338
        %v407 = vunpack.c.l.b16 %v339
        %v408 = vunpack.c.l.b16 %v340
        %v409 = vunpack.c.l.b16 %v341
        %v410 = vunpack.c.l.b16 %v342
        %v411 = vunpack.c.l.b16 %v343
        %v412 = vunpack.c.l.b16 %v344
        %v413 = vunpack.c.l.b16 %v345
        %v414 = vunpack.c.l.b16 %v346
        %v415 = vunpack.c.l.b16 %v347
        %v416 = vunpack.c.l.b16 %v348
        %v417 = vunpack.c.l.b16 %v349
        %v418 = vunpack.c.l.b16 %v350
        %v419 = vunpack.c.l.b16 %v351
        %v420 = vunpack.c.l.b16 %v352
        %v421 = vunpack.c.l.b16 %v353
        %v422 = vpack.c.b16 %v391, %v390
        %v423 = vpack.c.b16 %v393, %v392
        %v424 = vpack.c.b16 %v395, %v394
        %v425 = vpack.c.b16 %v397, %v396
        %v426 = vpack.c.b16 %v399, %v398
        %v427 = vpack.c.b16 %v401, %v400
        %v428 = vpack.c.b16 %v403, %v402
        %v429 = vpack.c.b16 %v405, %v404
        %v430 = vpack.c.b16 %v407, %v406
        %v431 = vpack.c.b16 %v409, %v408
        %v432 = vpack.c.b16 %v411, %v410
        %v433 = vpack.c.b16 %v413, %v412
        %v434 = vpack.c.b16 %v415, %v414
        %v435 = vpack.c.b16 %v417, %v416
        %v436 = vpack.c.b16 %v419, %v418
        %v437 = vpack.c.b16 %v421, %v420
        %454 = vmatpush.bf16.msra.mxu0 %v429
        %455 = vmatpush.bf16.msra.mxu0 %v428
        %456 = vmatpush.bf16.msra.mxu0 %v427
        %457 = vmatpush.bf16.msra.mxu0 %v426
        %458 = vmatpush.bf16.msra.mxu0 %v425
        %459 = vmatpush.bf16.msra.mxu0 %v424
        %460 = vmatpush.bf16.msra.mxu0 %v423
        %461 = vmatpush.bf16.msra.mxu0 %v422
        %462 = vmatmul.bf16.gmra.mxu0 %v320
        %v463 = vpop.f32.mrf.mxu0
        %v464 = vadd.f32 %v356, %v463
        %v465 = vpop.f32.mrf.mxu0
        %466 = vdwg.mxu0
        %467 = vmatpush.bf16.msra.mxu0 %v437
        %468 = vmatpush.bf16.msra.mxu0 %v436
        %469 = vmatpush.bf16.msra.mxu0 %v435
        %470 = vmatpush.bf16.msra.mxu0 %v434
        %471 = vmatpush.bf16.msra.mxu0 %v433
        %472 = vmatpush.bf16.msra.mxu0 %v432
        %473 = vmatpush.bf16.msra.mxu0 %v431
        %474 = vmatpush.bf16.msra.mxu0 %v430
        %475 = vmatmul.bf16.gmra.mxu0 %v321
        %v476 = vpop.f32.mrf.mxu0
        %v477 = vadd.f32 %v464, %v476
        %v478 = vpop.f32.mrf.mxu0
        %479 = vdwg.mxu0
        %v480 = vpack.c.bf16 %v477, %v477
        %481 = vst [vmem:[%s253] sm:$0xf] %v480
        %p482 = scmp.lt.s32.totalorder %s18, 1
        %s483 = scalar_select %p482, %s18, 1
        %s484 = smul.addr %s483, 4
        %s485 = scalar_lea.vmem %s5, %s484
        // Predicated region
        $region49: #{my_sequential_forward.1} parent=39 // pred_check
          %p486 = pneg %p146
        $region50: #{my_sequential_forward.1} parent=39 // pred_check_branch
          %488 = sbr.rel (%p486) target = $region52
        $region51: #{my_sequential_forward.1} parent=39 // pred_region
          _
        $region52: #{my_sequential_forward.1} parent=39 // pred_fallthru
          _
      $region40: #{my_sequential_forward.1} parent=5 // pred_fallthru
        _
      %p489 = scmp.le.s32.totalorder 2, %s13
      // Predicated region
      $region53: #{my_sequential_forward.1} parent=5 // pred_check
        %p490 = pneg %p489
      $region54: #{my_sequential_forward.1} parent=5 // pred_check_branch
        %492 = sbr.rel (%p490) target = $region56
      $region55: #{my_sequential_forward.1} parent=5 // pred_region
        %s493 = ssub.s32 %s13, 2
        // Predicated region
        $region57: #{my_sequential_forward.1} parent=55 // pred_check
          %p494 = pneg %p152
        $region58: #{my_sequential_forward.1} parent=55 // pred_check_branch
          %496 = sbr.rel (%p494) target = $region60
        $region59: #{my_sequential_forward.1} parent=55 // pred_region
          %p497 = scmp.lt.s32.totalorder %s19, 1
          %s498 = scalar_select %p497, %s19, 1
          %s499 = smul.addr %s498, 4
          %s500 = scalar_lea.vmem %s5, %s499
        $region60: #{my_sequential_forward.1} parent=55 // pred_fallthru
          _
      $region56: #{my_sequential_forward.1} parent=5 // pred_fallthru
        _
    $region6: #{my_sequential_forward.1} parent=1 // loop_footer
      %s17 = sadd.s32 1, %s13
    $region7: #{my_sequential_forward.1} parent=1 // loop_footer_branch
      %12 = sbr.rel target = $region3
    $region8: #{my_sequential_forward.1} parent=1 // loop_exit
      _
    %501 = vsyncpa [#allocation3], 1
    %s502 = scalar_lea.sflag [#allocation3], 1
    %503 = vsyncpa %s502, 1
    %504 = vsyncpa [#allocation5], 1

</llo_original>
